<compile_context>
chip_gen: v6e
topology: v6e:2x2x1
jax: 0.10.0
libtpu: 0.0.40
codegen_flags: <defaults>
</compile_context>

<pallas_src>
import functools

import jax
import jax.numpy as jnp
from jax.experimental import pallas as pl
from jax.experimental.pallas import tpu as pltpu


def _ce_pair_kernel(logits_ref, logits_aux_ref, target_ref,
                    nll_out_ref, *cnt_out,
                    hw, tile_pix, tiles_per_split, ignore_index):
    """One (batch, split, pixel-tile) grid step.

    logits_ref, logits_aux_ref : (1, C, TILE_PIX)  model dtype (f32 / bf16)
    target_ref                 : (1, 1, TILE_PIX)  int32
    nll_out_ref [, cnt_out]    : (1, 1, TILE_PIX)  f32 per-lane accumulators,
                                 VMEM-resident across the pixel-tile axis.
    """
    track_count = len(cnt_out) == 1
    jj = pl.program_id(2)

    @pl.when(jj == 0)
    def _():
        nll_out_ref[...] = jnp.zeros_like(nll_out_ref)
        if track_count:
            cnt_out[0][...] = jnp.zeros_like(cnt_out[0])

    t = target_ref[...]                                              # (1,1,T)

    # Linear pixel-tile index (split axis folded in).  Overflow tiles (clamped
    # in the index_map) and the ragged tail are both killed by `pix < hw`.
    j_lin = pl.program_id(1) * tiles_per_split + jj
    pix = j_lin * tile_pix + jax.lax.broadcasted_iota(jnp.int32, t.shape, 2)
    valid = pix < hw                                                 # (1,1,T)
    if ignore_index is not None:
        valid = valid & (t != ignore_index)

    C = logits_ref.shape[1]
    x1 = logits_ref[...].astype(jnp.float32)                         # (1,C,T)
    x2 = logits_aux_ref[...].astype(jnp.float32)

    m1 = jnp.max(x1, axis=1, keepdims=True)                          # (1,1,T)
    m2 = jnp.max(x2, axis=1, keepdims=True)

    # Stack both heads on the sublane axis so a single exp runs sublane-dense
    # (2C sublanes instead of two C-sublane-padded exps).
    z = jnp.concatenate([x1 - m1, x2 - m2], axis=1)                  # (1,2C,T)
    e = jnp.exp(z)
    sub = jax.lax.broadcasted_iota(jnp.int32, e.shape, 1)
    s1 = jnp.sum(jnp.where(sub < C, e, 0.0), axis=1, keepdims=True)  # head 1
    s2 = jnp.sum(e, axis=1, keepdims=True) - s1                      # head 2
    # Merged log: log(s1) + log(s2) == log(s1*s2); s1,s2 in [1,C] -> no overflow.
    lse12 = jnp.log(s1 * s2)                                         # (1,1,T)

    cls = jax.lax.broadcasted_iota(jnp.int32, x1.shape, 1)
    hit = cls == t
    x_t = (jnp.sum(jnp.where(hit, x1, 0.0), axis=1, keepdims=True)
           + jnp.sum(jnp.where(hit, x2, 0.0), axis=1, keepdims=True))

    # -logp1[t] - logp2[t] = (m1 + m2) + log(S1*S2) - (x1[t] + x2[t])
    nll = (m1 + m2) + lse12 - x_t                                    # (1,1,T)
    nll_out_ref[...] += jnp.where(valid, nll, 0.0)
    if track_count:
        cnt_out[0][...] += valid.astype(jnp.float32)


def cdnetv2_loss(logits, logits_aux, target, *, max_tile_pix=65536,
                 ignore_index=-100, vmem_budget_bytes=32 * 1024 * 1024):
    """logits, logits_aux: (N, C, H, W); target: (N, H, W) int.

    Returns scalar f32: CE_mean(logits, target) + CE_mean(logits_aux, target).
    """
    N, C, H, W = logits.shape
    hw = H * W

    # NCHW-native: free reshape, classes on sublanes, pixels on lanes.
    x = logits.reshape(N, C, hw)
    x_aux = logits_aux.reshape(N, C, hw)
    tgt = target.reshape(N, 1, hw).astype(jnp.int32)

    track_count = ignore_index is not None
    n_out = 2 if track_count else 1

    # Tile size: as big as the VMEM budget allows (pipelined buffers + f32
    # in-kernel temporaries), capped at max_tile_pix, multiple of 128.
    itemsize = jnp.dtype(logits.dtype).itemsize
    per_pix_bytes = (2 * 2 * C * itemsize       # two heads, double-buffered
                     + 2 * 4                    # int32 target, double-buffered
                     + n_out * 2 * 4            # f32 output accumulator blocks
                     + (8 * C + 16) * 4)        # f32 in-kernel temporaries (est.)
    tile_cap = max(128, (vmem_budget_bytes // per_pix_bytes) // 128 * 128)
    tile_pix = max(128, min(int(max_tile_pix), tile_cap, pl.cdiv(hw, 128) * 128))
    tile_pix = tile_pix // 128 * 128

    n_tiles = pl.cdiv(hw, tile_pix)
    n_split = 2 if n_tiles >= 2 else 1          # megacore pixel split (v7x)
    tps = pl.cdiv(n_tiles, n_split)             # tiles per split

    kernel = functools.partial(
        _ce_pair_kernel, hw=hw, tile_pix=tile_pix, tiles_per_split=tps,
        ignore_index=ignore_index)

    def in_map(n, s, jj):
        j = s * tps + jj
        return (n, 0, jnp.minimum(j, n_tiles - 1))   # clamp overflow tiles

    def out_map(n, s, jj):
        return (n * n_split + s, 0, 0)

    out_shape = [jax.ShapeDtypeStruct((N * n_split, 1, tile_pix), jnp.float32)]
    out_specs = [pl.BlockSpec((1, 1, tile_pix), out_map)]
    if track_count:
        out_shape.append(
            jax.ShapeDtypeStruct((N * n_split, 1, tile_pix), jnp.float32))
        out_specs.append(pl.BlockSpec((1, 1, tile_pix), out_map))

    outs = pl.pallas_call(
        kernel,
        out_shape=tuple(out_shape),
        grid_spec=pltpu.PrefetchScalarGridSpec(
            num_scalar_prefetch=0,
            grid=(N, n_split, tps),
            in_specs=[
                pl.BlockSpec((1, C, tile_pix), in_map),
                pl.BlockSpec((1, C, tile_pix), in_map),
                pl.BlockSpec((1, 1, tile_pix), in_map),
            ],
            out_specs=tuple(out_specs),
        ),
        compiler_params=pltpu.CompilerParams(
            dimension_semantics=("parallel", "parallel", "arbitrary"),
            vmem_limit_bytes=48 * 1024 * 1024),
    )(x, x_aux, tgt)

    total = jnp.sum(outs[0])                           # XLA tree reduce
    if track_count:
        # Matches PyTorch: all-ignored target -> 0/0 -> NaN.
        count = jnp.sum(outs[1])
    else:
        count = jnp.float32(N * hw)
    return (total / count).astype(jnp.float32)


def _reference(logits, logits_aux, target):
    """Pure-JAX reference: CrossEntropyLoss(mean) for both heads (no ignore)."""
    def ce(x):
        xt = jnp.transpose(x, (0, 2, 3, 1)).astype(jnp.float32)     # (N,H,W,C)
        logp = jax.nn.log_softmax(xt, axis=-1)
        nll = -jnp.take_along_axis(
            logp, target[..., None].astype(jnp.int32), axis=-1)[..., 0]
        return jnp.mean(nll)
    return ce(logits) + ce(logits_aux)


def _reference_ignore(logits, logits_aux, target, ignore_index=-100):
    """Pure-JAX reference with ignore_index (PyTorch mean semantics)."""
    tgt = target.astype(jnp.int32)
    valid = tgt != ignore_index
    safe_t = jnp.where(valid, tgt, 0)

    def ce_sum(x):
        xt = jnp.transpose(x, (0, 2, 3, 1)).astype(jnp.float32)
        logp = jax.nn.log_softmax(xt, axis=-1)
        nll = -jnp.take_along_axis(logp, safe_t[..., None], axis=-1)[..., 0]
        return jnp.sum(jnp.where(valid, nll, 0.0))

    cnt = jnp.sum(valid).astype(jnp.float32)
    return (ce_sum(logits) + ce_sum(logits_aux)) / cnt


if __name__ == "__main__":
    key = jax.random.PRNGKey(0)
    k1, k2, k3 = jax.random.split(key, 3)

    # Case 1: f32, hw divides the tile, no ignored pixels.
    N, C, H, W = 2, 4, 16, 16
    logits = jax.random.normal(k1, (N, C, H, W), dtype=jnp.float32)
    logits_aux = jax.random.normal(k2, (N, C, H, W), dtype=jnp.float32)
    target = jax.random.randint(k3, (N, H, W), 0, C, dtype=jnp.int32)

    out = jax.block_until_ready(jax.jit(cdnetv2_loss)(logits, logits_aux, target))
    ref = _reference(logits, logits_aux, target)
    assert jnp.allclose(out, ref, rtol=1e-5, atol=1e-5), (out, ref)

    # Case 2: bf16 logits, ragged tail (hw=288, tile=128 -> 3 tiles, 2-way split),
    # and ignore_index pixels present.
    H2, W2 = 16, 18
    l2 = jax.random.normal(k1, (N, C, H2, W2), dtype=jnp.bfloat16)
    l2a = jax.random.normal(k2, (N, C, H2, W2), dtype=jnp.bfloat16)
    t2 = jax.random.randint(k3, (N, H2, W2), 0, C, dtype=jnp.int32)
    t2 = t2.at[0, 0, :5].set(-100)
    out2 = jax.block_until_ready(
        jax.jit(functools.partial(cdnetv2_loss, max_tile_pix=128))(l2, l2a, t2))
    ref2 = _reference_ignore(l2, l2a, t2, ignore_index=-100)
    assert jnp.allclose(out2, ref2, rtol=1e-4, atol=1e-4), (out2, ref2)

    print("KERNEL_OK")
</pallas_src>

<mosaic_0001>
module attributes {stable_mosaic.version = 11 : i64} {
  func.func @_ce_pair_kernel(%arg0: i32, %arg1: i32, %arg2: i32, %arg3: memref<1x4x256xf32, #tpu.memory_space<vmem>>, %arg4: memref<1x4x256xf32, #tpu.memory_space<vmem>>, %arg5: memref<1x1x256xi32, #tpu.memory_space<vmem>>, %arg6: memref<1x1x256xf32, #tpu.memory_space<vmem>>, %arg7: memref<1x1x256xf32, #tpu.memory_space<vmem>>) attributes {dimension_semantics = [#tpu.dimension_semantics<parallel>, #tpu.dimension_semantics<parallel>, #tpu.dimension_semantics<arbitrary>], iteration_bounds = array<i64: 2, 1, 1>, scalar_prefetch = 0 : i64, scratch_operands = 0 : i64, tpu.core_type = #tpu.core_type<tc>, window_params = [{transform_indices = @transform_0, window_bounds = array<i64: 1, 4, 256>}, {transform_indices = @transform_1, window_bounds = array<i64: 1, 4, 256>}, {transform_indices = @transform_2, window_bounds = array<i64: 1, 1, 256>}, {transform_indices = @transform_3, window_bounds = array<i64: 1, 1, 256>}, {transform_indices = @transform_4, window_bounds = array<i64: 1, 1, 256>}]} {
    %c0_i32 = arith.constant 0 : i32
    %0 = arith.cmpi eq, %arg2, %c0_i32 : i32
    %1 = arith.extui %0 : i1 to i32
    %c0_i32_0 = arith.constant 0 : i32
    %2 = arith.cmpi ne, %1, %c0_i32_0 : i32
    scf.if %2 {
      %cst_31 = arith.constant 0.000000e+00 : f32
      %64 = vector.broadcast %cst_31 : f32 to vector<1x1x256xf32>
      %c0_32 = arith.constant 0 : index
      %c0_33 = arith.constant 0 : index
      %c0_34 = arith.constant 0 : index
      %65 = vector.load %arg6[%c0_32, %c0_33, %c0_34] : memref<1x1x256xf32, #tpu.memory_space<vmem>>, vector<1x1x256xf32>
      tpu.vector_store %arg6[%c0_32, %c0_33, %c0_34], %64 {strides = array<i32>} : memref<1x1x256xf32, #tpu.memory_space<vmem>>, vector<1x1x256xf32>,
      %cst_35 = arith.constant 0.000000e+00 : f32
      %66 = vector.broadcast %cst_35 : f32 to vector<1x1x256xf32>
      %c0_36 = arith.constant 0 : index
      %c0_37 = arith.constant 0 : index
      %c0_38 = arith.constant 0 : index
      %67 = vector.load %arg7[%c0_36, %c0_37, %c0_38] : memref<1x1x256xf32, #tpu.memory_space<vmem>>, vector<1x1x256xf32>
      tpu.vector_store %arg7[%c0_36, %c0_37, %c0_38], %66 {strides = array<i32>} : memref<1x1x256xf32, #tpu.memory_space<vmem>>, vector<1x1x256xf32>,
    } else {
    }
    %c0 = arith.constant 0 : index
    %c0_1 = arith.constant 0 : index
    %c0_2 = arith.constant 0 : index
    %3 = vector.load %arg5[%c0, %c0_1, %c0_2] : memref<1x1x256xi32, #tpu.memory_space<vmem>>, vector<1x1x256xi32>
    %c1_i32 = arith.constant 1 : i32
    %4 = arith.muli %arg1, %c1_i32 : i32
    %5 = arith.addi %4, %arg2 : i32
    %c256_i32 = arith.constant 256 : i32
    %6 = arith.muli %5, %c256_i32 : i32
    %7 = tpu.iota {dimensions = array<i32: 2>} : vector<1x1x256xi32>
    %8 = vector.broadcast %6 : i32 to vector<1x1x256xi32>
    %9 = arith.addi %8, %7 : vector<1x1x256xi32>
    %c256_i32_3 = arith.constant 256 : i32
    %10 = vector.broadcast %c256_i32_3 : i32 to vector<1x1x256xi32>
    %11 = arith.cmpi slt, %9, %10 : vector<1x1x256xi32>
    %c-100_i32 = arith.constant -100 : i32
    %12 = vector.broadcast %c-100_i32 : i32 to vector<1x1x256xi32>
    %13 = arith.cmpi ne, %3, %12 : vector<1x1x256xi32>
    %14 = arith.andi %11, %13 : vector<1x1x256xi1>
    %c0_4 = arith.constant 0 : index
    %c0_5 = arith.constant 0 : index
    %c0_6 = arith.constant 0 : index
    %15 = vector.load %arg3[%c0_4, %c0_5, %c0_6] : memref<1x4x256xf32, #tpu.memory_space<vmem>>, vector<1x4x256xf32>
    %c0_7 = arith.constant 0 : index
    %c0_8 = arith.constant 0 : index
    %c0_9 = arith.constant 0 : index
    %16 = vector.load %arg4[%c0_7, %c0_8, %c0_9] : memref<1x4x256xf32, #tpu.memory_space<vmem>>, vector<1x4x256xf32>
    %cst = arith.constant dense<0xFF800000> : vector<1x256xf32>
    %17 = vector.multi_reduction <maximumf>, %15, %cst [1] : vector<1x4x256xf32> to vector<1x256xf32>
    %18 = vector.shape_cast %17 : vector<1x256xf32> to vector<1x1x256xf32>
    %cst_10 = arith.constant dense<0xFF800000> : vector<1x256xf32>
    %19 = vector.multi_reduction <maximumf>, %16, %cst_10 [1] : vector<1x4x256xf32> to vector<1x256xf32>
    %20 = vector.shape_cast %19 : vector<1x256xf32> to vector<1x1x256xf32>
    %21 = vector.broadcast %18 : vector<1x1x256xf32> to vector<1x4x256xf32>
    %22 = arith.subf %15, %21 : vector<1x4x256xf32>
    %23 = vector.broadcast %20 : vector<1x1x256xf32> to vector<1x4x256xf32>
    %24 = arith.subf %16, %23 : vector<1x4x256xf32>
    %25 = tpu.concatenate %22, %24 in 1 : vector<1x4x256xf32>, vector<1x4x256xf32> -> vector<1x8x256xf32>
    %26 = math.exp %25 : vector<1x8x256xf32>
    %27 = tpu.iota {dimensions = array<i32: 1>} : vector<1x8x256xi32>
    %c4_i32 = arith.constant 4 : i32
    %28 = vector.broadcast %c4_i32 : i32 to vector<1x8x256xi32>
    %29 = arith.cmpi slt, %27, %28 : vector<1x8x256xi32>
    %cst_11 = arith.constant 0.000000e+00 : f32
    %30 = vector.broadcast %cst_11 : f32 to vector<1x8x256xf32>
    %31 = arith.select %29, %26, %30 : vector<1x8x256xi1>, vector<1x8x256xf32>
    %cst_12 = arith.constant dense<0.000000e+00> : vector<1x256xf32>
    %32 = vector.multi_reduction <add>, %31, %cst_12 [1] : vector<1x8x256xf32> to vector<1x256xf32>
    %33 = vector.shape_cast %32 : vector<1x256xf32> to vector<1x1x256xf32>
    %cst_13 = arith.constant dense<0.000000e+00> : vector<1x256xf32>
    %34 = vector.multi_reduction <add>, %26, %cst_13 [1] : vector<1x8x256xf32> to vector<1x256xf32>
    %35 = vector.shape_cast %34 : vector<1x256xf32> to vector<1x1x256xf32>
    %36 = arith.subf %35, %33 : vector<1x1x256xf32>
    %37 = arith.mulf %33, %36 : vector<1x1x256xf32>
    %38 = math.log %37 : vector<1x1x256xf32>
    %39 = tpu.iota {dimensions = array<i32: 1>} : vector<1x4x256xi32>
    %40 = vector.broadcast %3 : vector<1x1x256xi32> to vector<1x4x256xi32>
    %41 = arith.cmpi eq, %39, %40 : vector<1x4x256xi32>
    %cst_14 = arith.constant 0.000000e+00 : f32
    %42 = vector.broadcast %cst_14 : f32 to vector<1x4x256xf32>
    %43 = arith.select %41, %15, %42 : vector<1x4x256xi1>, vector<1x4x256xf32>
    %cst_15 = arith.constant dense<0.000000e+00> : vector<1x256xf32>
    %44 = vector.multi_reduction <add>, %43, %cst_15 [1] : vector<1x4x256xf32> to vector<1x256xf32>
    %45 = vector.shape_cast %44 : vector<1x256xf32> to vector<1x1x256xf32>
    %cst_16 = arith.constant 0.000000e+00 : f32
    %46 = vector.broadcast %cst_16 : f32 to vector<1x4x256xf32>
    %47 = arith.select %41, %16, %46 : vector<1x4x256xi1>, vector<1x4x256xf32>
    %cst_17 = arith.constant dense<0.000000e+00> : vector<1x256xf32>
    %48 = vector.multi_reduction <add>, %47, %cst_17 [1] : vector<1x4x256xf32> to vector<1x256xf32>
    %49 = vector.shape_cast %48 : vector<1x256xf32> to vector<1x1x256xf32>
    %50 = arith.addf %45, %49 : vector<1x1x256xf32>
    %51 = arith.addf %18, %20 : vector<1x1x256xf32>
    %52 = arith.addf %51, %38 : vector<1x1x256xf32>
    %53 = arith.subf %52, %50 : vector<1x1x256xf32>
    %c0_18 = arith.constant 0 : index
    %c0_19 = arith.constant 0 : index
    %c0_20 = arith.constant 0 : index
    %54 = vector.load %arg6[%c0_18, %c0_19, %c0_20] : memref<1x1x256xf32, #tpu.memory_space<vmem>>, vector<1x1x256xf32>
    %cst_21 = arith.constant 0.000000e+00 : f32
    %55 = vector.broadcast %cst_21 : f32 to vector<1x1x256xf32>
    %56 = arith.select %14, %53, %55 : vector<1x1x256xi1>, vector<1x1x256xf32>
    %57 = arith.addf %54, %56 : vector<1x1x256xf32>
    %c0_22 = arith.constant 0 : index
    %c0_23 = arith.constant 0 : index
    %c0_24 = arith.constant 0 : index
    %58 = vector.load %arg6[%c0_22, %c0_23, %c0_24] : memref<1x1x256xf32, #tpu.memory_space<vmem>>, vector<1x1x256xf32>
    tpu.vector_store %arg6[%c0_22, %c0_23, %c0_24], %57 {strides = array<i32>} : memref<1x1x256xf32, #tpu.memory_space<vmem>>, vector<1x1x256xf32>,
    %c0_25 = arith.constant 0 : index
    %c0_26 = arith.constant 0 : index
    %c0_27 = arith.constant 0 : index
    %59 = vector.load %arg7[%c0_25, %c0_26, %c0_27] : memref<1x1x256xf32, #tpu.memory_space<vmem>>, vector<1x1x256xf32>
    %60 = arith.extui %14 : vector<1x1x256xi1> to vector<1x1x256xi32>
    %61 = arith.sitofp %60 : vector<1x1x256xi32> to vector<1x1x256xf32>
    %62 = arith.addf %59, %61 : vector<1x1x256xf32>
    %c0_28 = arith.constant 0 : index
    %c0_29 = arith.constant 0 : index
    %c0_30 = arith.constant 0 : index
    %63 = vector.load %arg7[%c0_28, %c0_29, %c0_30] : memref<1x1x256xf32, #tpu.memory_space<vmem>>, vector<1x1x256xf32>
    tpu.vector_store %arg7[%c0_28, %c0_29, %c0_30], %62 {strides = array<i32>} : memref<1x1x256xf32, #tpu.memory_space<vmem>>, vector<1x1x256xf32>,
    return
  }
  func.func @transform_0(%arg0: i32, %arg1: i32, %arg2: i32) -> (i32, i32, i32) {
    %c1_i32 = arith.constant 1 : i32
    %0 = arith.muli %arg1, %c1_i32 : i32
    %1 = arith.addi %0, %arg2 : i32
    %c0_i32 = arith.constant 0 : i32
    %2 = arith.minsi %1, %c0_i32 : i32
    %c0_i32_0 = arith.constant 0 : i32
    %c0_i32_1 = arith.constant 0 : i32
    return %arg0, %c0_i32_0, %2 : i32, i32, i32
  }
  func.func @transform_1(%arg0: i32, %arg1: i32, %arg2: i32) -> (i32, i32, i32) {
    %c1_i32 = arith.constant 1 : i32
    %0 = arith.muli %arg1, %c1_i32 : i32
    %1 = arith.addi %0, %arg2 : i32
    %c0_i32 = arith.constant 0 : i32
    %2 = arith.minsi %1, %c0_i32 : i32
    %c0_i32_0 = arith.constant 0 : i32
    %c0_i32_1 = arith.constant 0 : i32
    return %arg0, %c0_i32_0, %2 : i32, i32, i32
  }
  func.func @transform_2(%arg0: i32, %arg1: i32, %arg2: i32) -> (i32, i32, i32) {
    %c1_i32 = arith.constant 1 : i32
    %0 = arith.muli %arg1, %c1_i32 : i32
    %1 = arith.addi %0, %arg2 : i32
    %c0_i32 = arith.constant 0 : i32
    %2 = arith.minsi %1, %c0_i32 : i32
    %c0_i32_0 = arith.constant 0 : i32
    %c0_i32_1 = arith.constant 0 : i32
    return %arg0, %c0_i32_0, %2 : i32, i32, i32
  }
  func.func @transform_3(%arg0: i32, %arg1: i32, %arg2: i32) -> (i32, i32, i32) {
    %c1_i32 = arith.constant 1 : i32
    %0 = arith.muli %arg0, %c1_i32 : i32
    %1 = arith.addi %0, %arg1 : i32
    %c0_i32 = arith.constant 0 : i32
    %c0_i32_0 = arith.constant 0 : i32
    %c0_i32_1 = arith.constant 0 : i32
    return %1, %c0_i32, %c0_i32_0 : i32, i32, i32
  }
  func.func @transform_4(%arg0: i32, %arg1: i32, %arg2: i32) -> (i32, i32, i32) {
    %c1_i32 = arith.constant 1 : i32
    %0 = arith.muli %arg0, %c1_i32 : i32
    %1 = arith.addi %0, %arg1 : i32
    %c0_i32 = arith.constant 0 : i32
    %c0_i32_0 = arith.constant 0 : i32
    %c0_i32_1 = arith.constant 0 : i32
    return %1, %c0_i32, %c0_i32_0 : i32, i32, i32
  }
}

</mosaic_0001>

<llo_original>
// kernel: cdnetv2_loss.1
$region0: #{cdnetv2_loss.1}
  #allocation0 [shape = 'u32[]', space=smem, size = 0x4, offset = 0x4, fixed_abs, tag = 'smem constant byte address 0x4 - core index']
  #allocation1 [shape = 'u32[144,128]{1,0:T(1,128)}', space=vmem, size = 0x12000, scoped, tag = 'internal scratch']
  %s0 = inlined_call_operand.vmem [shape: f32[2,4,256], index: 0, kind: input, shape index: {}]
  %s1 = inlined_call_operand.vmem [shape: f32[2,4,256], index: 1, kind: input, shape index: {}]
  %s2 = inlined_call_operand.vmem [shape: s32[2,1,256], index: 2, kind: input, shape index: {}]
  %s3 = inlined_call_operand.vmem [shape: f32[2,1,256], index: 3, kind: output, shape index: {0}]
  %s4 = inlined_call_operand.vmem [shape: f32[2,1,256], index: 4, kind: output, shape index: {1}]
  %5 = xla_tuple %s3, %s4
  %s6 = sld [smem:[#allocation0]]
  $region57: #{cdnetv2_loss.1} parent=0
    _
  %s8 = ssub.s32 1, %s6
  %s9 = scalar_select 0, %s8, %s6
  loop: start=0, step=1, limit=4
  $region2: #{cdnetv2_loss.1} parent=0 // loop_pre_header
    _
  $region3: #{cdnetv2_loss.1} parent=0 // loop_header
    %s11 = sphi 0, %s15
    %p12 = scmp.ge.s32.totalorder %s11, 4
    %s18 = sphi 0, %s37
    %s19 = sphi 0, %s33
    %s20 = sphi 0, %s29
    %s21 = sphi 0, %s18
    %s22 = sphi 0, %s19
    %s23 = sphi 0, %s20
    %s24 = sphi 0, %s21
    %s25 = sphi 0, %s22
    %s26 = sphi 0, %s23
    %s48 = sphi 0, %s50
    %s51 = sphi 0, %s48
    %s52 = sphi 0, %s51
    %s68 = sphi 0, %s52
    %s82 = sphi 0, %s84
    %s85 = sphi 0, %s82
    %s86 = sphi 0, %s85
    %s102 = sphi 0, %s86
    %s116 = sphi 0, %s118
    %s119 = sphi 0, %s116
    %s120 = sphi 0, %s119
    %s136 = sphi 0, %s120
    %s144 = sphi 0, %s146
    %s147 = sphi 0, %s144
    %s148 = sphi 0, %s147
    %s164 = sphi 0, %s148
    %s172 = sphi 0, %s174
    %s175 = sphi 0, %s172
    %s176 = sphi 0, %s175
    %s192 = sphi 0, %s176
  $region4: #{cdnetv2_loss.1} parent=0 // loop_header_branch
    %14 = sbr.rel (%p12) target = $region8
  $region5: #{cdnetv2_loss.1} parent=0 // loop_body
    %s16 = ssub.s32 %s11, 1
    %s17 = ssub.s32 %s11, 2
    %s27 = sadd.s32 1, %s20
    %p28 = scmp.ge.s32.totalorder %s27, 1
    %s29 = scalar_select %p28, 0, %s27
    %s30 = sadd.s32 1, %s19
    %s31 = scalar_select %p28, %s30, %s19
    %p32 = scmp.ge.s32.totalorder %s31, 1
    %s33 = scalar_select %p32, 0, %s31
    %s34 = sadd.s32 1, %s18
    %s35 = scalar_select %p32, %s34, %s18
    %p36 = scmp.ge.s32.totalorder %s35, 2
    %s37 = scalar_select %p36, 0, %s35
    %s38 = sadd.s32 %s19, %s20
    %p39 = scmp.lt.s32.totalorder %s38, 0
    %s40 = scalar_select %p39, %s38, 0
    %s41 = sadd.s32 %s33, %s29
    %p42 = scmp.lt.s32.totalorder %s41, 0
    %s43 = scalar_select %p42, %s41, 0
    %s44 = ssub.s32 %s18, %s37
    %s45 = ssub.s32 %s40, %s43
    %s46 = sor.u32 %s44, %s45
    %p47 = scmp.eq.s32.totalorder %s46, 0
    %s49 = sadd.s32 %s48, 1
    %s50 = scalar_select %p47, %s48, %s49
    %p53 = pneg %p47
    %p54 = scmp.eq.s32.totalorder %s11, 1
    %p55 = por %p53, %p54
    %p56 = scmp.ne.s32.totalorder %s48, %s51
    %p57 = scmp.eq.s32.totalorder %s11, 0
    %p58 = por %p56, %p57
    %p59 = scmp.ne.s32.totalorder %s48, %s51
    %p60 = scmp.eq.s32.totalorder %s16, 1
    %p61 = por %p59, %p60
    %p62 = scmp.ne.s32.totalorder %s51, %s52
    %p63 = scmp.eq.s32.totalorder %s16, 0
    %p64 = por %p62, %p63
    %p65 = scmp.ne.s32.totalorder %s51, %s52
    %p66 = scmp.eq.s32.totalorder %s17, 1
    %p67 = por %p65, %p66
    %p69 = scmp.ne.s32.totalorder %s52, %s68
    %p70 = scmp.eq.s32.totalorder %s17, 0
    %p71 = por %p69, %p70
    %s72 = sadd.s32 %s19, %s20
    %p73 = scmp.lt.s32.totalorder %s72, 0
    %s74 = scalar_select %p73, %s72, 0
    %s75 = sadd.s32 %s33, %s29
    %p76 = scmp.lt.s32.totalorder %s75, 0
    %s77 = scalar_select %p76, %s75, 0
    %s78 = ssub.s32 %s18, %s37
    %s79 = ssub.s32 %s74, %s77
    %s80 = sor.u32 %s78, %s79
    %p81 = scmp.eq.s32.totalorder %s80, 0
    %s83 = sadd.s32 %s82, 1
    %s84 = scalar_select %p81, %s82, %s83
    %p87 = pneg %p81
    %p88 = scmp.eq.s32.totalorder %s11, 1
    %p89 = por %p87, %p88
    %p90 = scmp.ne.s32.totalorder %s82, %s85
    %p91 = scmp.eq.s32.totalorder %s11, 0
    %p92 = por %p90, %p91
    %p93 = scmp.ne.s32.totalorder %s82, %s85
    %p94 = scmp.eq.s32.totalorder %s16, 1
    %p95 = por %p93, %p94
    %p96 = scmp.ne.s32.totalorder %s85, %s86
    %p97 = scmp.eq.s32.totalorder %s16, 0
    %p98 = por %p96, %p97
    %p99 = scmp.ne.s32.totalorder %s85, %s86
    %p100 = scmp.eq.s32.totalorder %s17, 1
    %p101 = por %p99, %p100
    %p103 = scmp.ne.s32.totalorder %s86, %s102
    %p104 = scmp.eq.s32.totalorder %s17, 0
    %p105 = por %p103, %p104
    %s106 = sadd.s32 %s19, %s20
    %p107 = scmp.lt.s32.totalorder %s106, 0
    %s108 = scalar_select %p107, %s106, 0
    %s109 = sadd.s32 %s33, %s29
    %p110 = scmp.lt.s32.totalorder %s109, 0
    %s111 = scalar_select %p110, %s109, 0
    %s112 = ssub.s32 %s18, %s37
    %s113 = ssub.s32 %s108, %s111
    %s114 = sor.u32 %s112, %s113
    %p115 = scmp.eq.s32.totalorder %s114, 0
    %s117 = sadd.s32 %s116, 1
    %s118 = scalar_select %p115, %s116, %s117
    %p121 = pneg %p115
    %p122 = scmp.eq.s32.totalorder %s11, 1
    %p123 = por %p121, %p122
    %p124 = scmp.ne.s32.totalorder %s116, %s119
    %p125 = scmp.eq.s32.totalorder %s11, 0
    %p126 = por %p124, %p125
    %p127 = scmp.ne.s32.totalorder %s116, %s119
    %p128 = scmp.eq.s32.totalorder %s16, 1
    %p129 = por %p127, %p128
    %p130 = scmp.ne.s32.totalorder %s119, %s120
    %p131 = scmp.eq.s32.totalorder %s16, 0
    %p132 = por %p130, %p131
    %p133 = scmp.ne.s32.totalorder %s119, %s120
    %p134 = scmp.eq.s32.totalorder %s17, 1
    %p135 = por %p133, %p134
    %p137 = scmp.ne.s32.totalorder %s120, %s136
    %p138 = scmp.eq.s32.totalorder %s17, 0
    %p139 = por %p137, %p138
    %s140 = sadd.s32 %s18, %s19
    %s141 = sadd.s32 %s37, %s33
    %s142 = ssub.s32 %s140, %s141
    %p143 = scmp.eq.s32.totalorder %s142, 0
    %s145 = sadd.s32 %s144, 1
    %s146 = scalar_select %p143, %s144, %s145
    %p149 = pneg %p143
    %p150 = scmp.eq.s32.totalorder %s11, 1
    %p151 = por %p149, %p150
    %p152 = scmp.ne.s32.totalorder %s144, %s147
    %p153 = scmp.eq.s32.totalorder %s11, 0
    %p154 = por %p152, %p153
    %p155 = scmp.ne.s32.totalorder %s144, %s147
    %p156 = scmp.eq.s32.totalorder %s16, 1
    %p157 = por %p155, %p156
    %p158 = scmp.ne.s32.totalorder %s147, %s148
    %p159 = scmp.eq.s32.totalorder %s16, 0
    %p160 = por %p158, %p159
    %p161 = scmp.ne.s32.totalorder %s147, %s148
    %p162 = scmp.eq.s32.totalorder %s17, 1
    %p163 = por %p161, %p162
    %p165 = scmp.ne.s32.totalorder %s148, %s164
    %p166 = scmp.eq.s32.totalorder %s17, 0
    %p167 = por %p165, %p166
    %s168 = sadd.s32 %s18, %s19
    %s169 = sadd.s32 %s37, %s33
    %s170 = ssub.s32 %s168, %s169
    %p171 = scmp.eq.s32.totalorder %s170, 0
    %s173 = sadd.s32 %s172, 1
    %s174 = scalar_select %p171, %s172, %s173
    %p177 = pneg %p171
    %p178 = scmp.eq.s32.totalorder %s11, 1
    %p179 = por %p177, %p178
    %p180 = scmp.ne.s32.totalorder %s172, %s175
    %p181 = scmp.eq.s32.totalorder %s11, 0
    %p182 = por %p180, %p181
    %p183 = scmp.ne.s32.totalorder %s172, %s175
    %p184 = scmp.eq.s32.totalorder %s16, 1
    %p185 = por %p183, %p184
    %p186 = scmp.ne.s32.totalorder %s175, %s176
    %p187 = scmp.eq.s32.totalorder %s16, 0
    %p188 = por %p186, %p187
    %p189 = scmp.ne.s32.totalorder %s175, %s176
    %p190 = scmp.eq.s32.totalorder %s17, 1
    %p191 = por %p189, %p190
    %p193 = scmp.ne.s32.totalorder %s176, %s192
    %p194 = scmp.eq.s32.totalorder %s17, 0
    %p195 = por %p193, %p194
    %p196 = scmp.le.s32.totalorder 1, %s11
    %p197 = scmp.lt.s32.totalorder %s11, 3
    %p198 = pnand %p196, %p197
    %p199 = pneg %p198
    // Predicated region
    $region9: #{cdnetv2_loss.1} parent=5 // pred_check
      _
    $region10: #{cdnetv2_loss.1} parent=5 // pred_check_branch
      %201 = sbr.rel (%p198) target = $region12
    $region11: #{cdnetv2_loss.1} parent=5 // pred_region
      %s202 = ssub.s32 %s11, 1
    $region12: #{cdnetv2_loss.1} parent=5 // pred_fallthru
      _
    %p203 = scmp.lt.s32.totalorder %s11, 2
    // Predicated region
    $region13: #{cdnetv2_loss.1} parent=5 // pred_check
      %p204 = pneg %p203
    $region14: #{cdnetv2_loss.1} parent=5 // pred_check_branch
      %206 = sbr.rel (%p204) target = $region16
    $region15: #{cdnetv2_loss.1} parent=5 // pred_region
      // Predicated region
      $region17: #{cdnetv2_loss.1} parent=15 // pred_check
        %p207 = pneg %p58
      $region18: #{cdnetv2_loss.1} parent=15 // pred_check_branch
        %209 = sbr.rel (%p207) target = $region20
      $region19: #{cdnetv2_loss.1} parent=15 // pred_region
        %s210 = sadd.s32 %s19, %s20
        %p211 = scmp.lt.s32.totalorder %s210, 0
        %s212 = scalar_select %p211, %s210, 0
        %s213 = smul.u32 2, %s212
        %p214 = scmp.lt.s32.totalorder %s18, 1
        %s215 = scalar_select %p214, %s18, 1
        %p216 = scmp.lt.s32.totalorder %s213, 1
        %s217 = scalar_select %p216, %s213, 1
        %s218 = smul.addr %s215, 2
        %s219 = sadd.s32 %s217, %s218
        %s220 = smul.addr %s219, 4
        %s221 = scalar_lea.vmem %s0, %s220
        %s222 = sadd.s32 %s19, %s20
        %p223 = scmp.lt.s32.totalorder %s222, 0
        %s224 = scalar_select %p223, %s222, 0
        %s225 = smul.u32 2, %s224
      $region20: #{cdnetv2_loss.1} parent=15 // pred_fallthru
        _
      // Predicated region
      $region21: #{cdnetv2_loss.1} parent=15 // pred_check
        %p226 = pneg %p92
      $region22: #{cdnetv2_loss.1} parent=15 // pred_check_branch
        %228 = sbr.rel (%p226) target = $region24
      $region23: #{cdnetv2_loss.1} parent=15 // pred_region
        %s229 = sadd.s32 %s19, %s20
        %p230 = scmp.lt.s32.totalorder %s229, 0
        %s231 = scalar_select %p230, %s229, 0
        %s232 = smul.u32 2, %s231
        %p233 = scmp.lt.s32.totalorder %s18, 1
        %s234 = scalar_select %p233, %s18, 1
        %p235 = scmp.lt.s32.totalorder %s232, 1
        %s236 = scalar_select %p235, %s232, 1
        %s237 = smul.addr %s234, 2
        %s238 = sadd.s32 %s236, %s237
        %s239 = smul.addr %s238, 4
        %s240 = scalar_lea.vmem %s1, %s239
        %s241 = sadd.s32 %s19, %s20
        %p242 = scmp.lt.s32.totalorder %s241, 0
        %s243 = scalar_select %p242, %s241, 0
        %s244 = smul.u32 2, %s243
      $region24: #{cdnetv2_loss.1} parent=15 // pred_fallthru
        _
      // Predicated region
      $region25: #{cdnetv2_loss.1} parent=15 // pred_check
        %p245 = pneg %p126
      $region26: #{cdnetv2_loss.1} parent=15 // pred_check_branch
        %247 = sbr.rel (%p245) target = $region28
      $region27: #{cdnetv2_loss.1} parent=15 // pred_region
        %s248 = sadd.s32 %s19, %s20
        %p249 = scmp.lt.s32.totalorder %s248, 0
        %s250 = scalar_select %p249, %s248, 0
        %s251 = smul.u32 2, %s250
        %p252 = scmp.lt.s32.totalorder %s18, 1
        %s253 = scalar_select %p252, %s18, 1
        %p254 = scmp.lt.s32.totalorder %s251, 1
        %s255 = scalar_select %p254, %s251, 1
        %s256 = smul.addr %s253, 2
        %s257 = sadd.s32 %s255, %s256
        %s258 = scalar_lea.vmem %s2, %s257
        %s259 = sadd.s32 %s19, %s20
        %p260 = scmp.lt.s32.totalorder %s259, 0
        %s261 = scalar_select %p260, %s259, 0
        %s262 = smul.u32 2, %s261
      $region28: #{cdnetv2_loss.1} parent=15 // pred_fallthru
        _
    $region16: #{cdnetv2_loss.1} parent=5 // pred_fallthru
      _
    %p263 = scmp.le.s32.totalorder 1, %s11
    %p264 = scmp.lt.s32.totalorder %s11, 3
    %p265 = pnand %p263, %p264
    %p266 = pneg %p265
    // Predicated region
    $region29: #{cdnetv2_loss.1} parent=5 // pred_check
      _
    $region30: #{cdnetv2_loss.1} parent=5 // pred_check_branch
      %268 = sbr.rel (%p265) target = $region32
    $region31: #{cdnetv2_loss.1} parent=5 // pred_region
      %s269 = ssub.s32 %s11, 1
      %s270 = sadd.s32 %s22, %s23
      %p271 = scmp.lt.s32.totalorder %s270, 0
      %s272 = scalar_select %p271, %s270, 0
      %s273 = smul.u32 2, %s272
      %p274 = scmp.lt.s32.totalorder %s21, 1
      %s275 = scalar_select %p274, %s21, 1
      %p276 = scmp.lt.s32.totalorder %s273, 1
      %s277 = scalar_select %p276, %s273, 1
      %s278 = smul.addr %s275, 2
      %s279 = sadd.s32 %s277, %s278
      %s280 = smul.addr %s279, 4
      %s281 = scalar_lea.vmem %s0, %s280
      %p282 = pneg %p64
      %p283 = pneg %p61
      %s284 = sadd.s32 %s22, %s23
      %p285 = scmp.lt.s32.totalorder %s284, 0
      %s286 = scalar_select %p285, %s284, 0
      %s287 = smul.u32 2, %s286
      %p288 = scmp.lt.s32.totalorder %s21, 1
      %s289 = scalar_select %p288, %s21, 1
      %p290 = scmp.lt.s32.totalorder %s287, 1
      %s291 = scalar_select %p290, %s287, 1
      %s292 = smul.addr %s289, 2
      %s293 = sadd.s32 %s291, %s292
      %s294 = smul.addr %s293, 4
      %s295 = scalar_lea.vmem %s1, %s294
      %p296 = pneg %p98
      %p297 = pneg %p95
      %s298 = sadd.s32 %s22, %s23
      %p299 = scmp.lt.s32.totalorder %s298, 0
      %s300 = scalar_select %p299, %s298, 0
      %s301 = smul.u32 2, %s300
      %p302 = scmp.lt.s32.totalorder %s21, 1
      %s303 = scalar_select %p302, %s21, 1
      %p304 = scmp.lt.s32.totalorder %s301, 1
      %s305 = scalar_select %p304, %s301, 1
      %s306 = smul.addr %s303, 2
      %s307 = sadd.s32 %s305, %s306
      %s308 = scalar_lea.vmem %s2, %s307
      %p309 = pneg %p132
      %p310 = pneg %p129
      %p311 = pneg %p160
      %p312 = pneg %p157
      %s313 = sadd.s32 %s21, %s22
      %p314 = scmp.lt.s32.totalorder %s313, 1
      %s315 = scalar_select %p314, %s313, 1
      %s316 = smul.addr %s315, 2
      %s317 = scalar_lea.vmem %s3, %s316
      %p318 = pneg %p188
      %p319 = pneg %p185
      %s320 = sadd.s32 %s21, %s22
      %p321 = scmp.lt.s32.totalorder %s320, 1
      %s322 = scalar_select %p321, %s320, 1
      %s323 = smul.addr %s322, 2
      %s324 = scalar_lea.vmem %s4, %s323
      %s325 = sadd.s32 %s22, %s23
      %p326 = scmp.lt.s32.totalorder %s325, 0
      %s327 = scalar_select %p326, %s325, 0
      %s328 = smul.u32 2, %s327
      %p329 = scmp.lt.s32.totalorder %s21, 1
      %s330 = scalar_select %p329, %s21, 1
      %p331 = scmp.lt.s32.totalorder %s328, 1
      %s332 = scalar_select %p331, %s328, 1
      %s333 = smul.addr %s330, 2
      %s334 = sadd.s32 %s332, %s333
      %s335 = smul.addr %s334, 4
      %s336 = scalar_lea.vmem %s0, %s335
      %s337 = sadd.s32 %s22, %s23
      %p338 = scmp.lt.s32.totalorder %s337, 0
      %s339 = scalar_select %p338, %s337, 0
      %s340 = smul.u32 2, %s339
      %s341 = sadd.s32 %s22, %s23
      %p342 = scmp.lt.s32.totalorder %s341, 0
      %s343 = scalar_select %p342, %s341, 0
      %s344 = smul.u32 2, %s343
      %p345 = scmp.lt.s32.totalorder %s21, 1
      %s346 = scalar_select %p345, %s21, 1
      %p347 = scmp.lt.s32.totalorder %s344, 1
      %s348 = scalar_select %p347, %s344, 1
      %s349 = smul.addr %s346, 2
      %s350 = sadd.s32 %s348, %s349
      %s351 = smul.addr %s350, 4
      %s352 = scalar_lea.vmem %s1, %s351
      %s353 = sadd.s32 %s22, %s23
      %p354 = scmp.lt.s32.totalorder %s353, 0
      %s355 = scalar_select %p354, %s353, 0
      %s356 = smul.u32 2, %s355
      %s357 = sadd.s32 %s22, %s23
      %p358 = scmp.lt.s32.totalorder %s357, 0
      %s359 = scalar_select %p358, %s357, 0
      %s360 = smul.u32 2, %s359
      %p361 = scmp.lt.s32.totalorder %s21, 1
      %s362 = scalar_select %p361, %s21, 1
      %p363 = scmp.lt.s32.totalorder %s360, 1
      %s364 = scalar_select %p363, %s360, 1
      %s365 = smul.addr %s362, 2
      %s366 = sadd.s32 %s364, %s365
      %s367 = scalar_lea.vmem %s2, %s366
      %s368 = sadd.s32 %s22, %s23
      %p369 = scmp.lt.s32.totalorder %s368, 0
      %s370 = scalar_select %p369, %s368, 0
      %s371 = smul.u32 2, %s370
      %s372 = sadd.s32 %s21, %s22
      %p373 = scmp.lt.s32.totalorder %s372, 1
      %s374 = scalar_select %p373, %s372, 1
      %s375 = smul.addr %s374, 2
      %s376 = scalar_lea.vmem %s3, %s375
      %s377 = sadd.s32 %s21, %s22
      %s378 = sadd.s32 %s21, %s22
      %p379 = scmp.lt.s32.totalorder %s378, 1
      %s380 = scalar_select %p379, %s378, 1
      %s381 = smul.addr %s380, 2
      %s382 = scalar_lea.vmem %s4, %s381
      %s383 = sadd.s32 %s21, %s22
      %p384 = scmp.eq.s32.totalorder %s23, 0
      // Predicated region
      $region33: #{cdnetv2_loss.1} parent=31 // pred_check
        %p385 = pneg %p384
      $region34: #{cdnetv2_loss.1} parent=31 // pred_check_branch
        %387 = sbr.rel (%p385) target = $region36
      $region35: #{cdnetv2_loss.1} parent=31 // pred_region
        %v388 = vlaneseq
        %vm389 = vcmp.ge.s32.totalorder %v388, 0
        %vm390 = vcmp.lt.s32.totalorder %v388, 256
        %vm391 = vmand %vm389, %vm390
        %392 = vst.msk [vmem:[%s376] sm:$0x3] %vm391, 0.0
        %393 = vst.msk [vmem:[%s382] sm:$0x3] %vm391, 0.0
      $region36: #{cdnetv2_loss.1} parent=31 // pred_fallthru
        _
      %v394 = vld [vmem:[%s367] sm:$0x3]
      %s395 = sadd.s32 %s22, %s23
      %s396 = smul.u32 %s395, 256
      %v397 = vlaneseq
      %v398 = vand.u32 %v397, 127
      %v399 = vadd.s32 %v398, 128
      %v400 = vstv %s396
      %v401 = vadd.s32 %v400, %v398
      %v402 = vadd.s32 %v400, %v399
      %vm403 = vcmp.lt.s32.totalorder %v401, 256
      %vm404 = vcmp.lt.s32.totalorder %v402, 256
      %vm405 = vcmp.ne.s32.totalorder %v394, 4294967196
      %v406 = vsel %vm405, 1, 0
      %v407 = vlaneseq
      %v408 = vshrl.u32 %v407, 7
      %v409 = vsub.s32 0, %v408
      %v410 = vrot.slane %v406, %v409
      %v411 = vlaneseq
      %v412 = vshrl.u32 %v411, 7
      %v413 = vsub.s32 1, %v412
      %v414 = vrot.slane %v406, %v413
      %vm415 = vcmp.ne.s32.totalorder %v410, 0
      %vm416 = vcmp.ne.s32.totalorder %v414, 0
      %vm417 = vmand %vm403, %vm415
      %vm418 = vmand %vm404, %vm416
      %v419 = vld [vmem:[%s336] sm:$0xff]
      %v420 = vld [vmem:[%s352] sm:$0xff]
      %v422 = vcombine.high %v419, %v419
      %vm424 = vcmask 1043456
      %v425 = vsel %vm424, %v419, -inf
      %v426 = vrot.slane %v425, 4
      %v427 = vmax.f32 %v425, %v426
      %v428 = vrot.slane %v427, 2
      %v429 = vmax.f32 %v427, %v428
      %v430 = vrot.slane %v429, 1
      %v431 = vmax.f32 %v429, %v430
      %v432 = vsel %vm424, %v422, -inf
      %v433 = vrot.slane %v432, 4
      %v434 = vmax.f32 %v432, %v433
      %v435 = vrot.slane %v434, 2
      %v436 = vmax.f32 %v434, %v435
      %v437 = vrot.slane %v436, 1
      %v438 = vmax.f32 %v436, %v437
      %v440 = vcombine.high %v420, %v420
      %v442 = vsel %vm424, %v420, -inf
      %v443 = vrot.slane %v442, 4
      %v444 = vmax.f32 %v442, %v443
      %v445 = vrot.slane %v444, 2
      %v446 = vmax.f32 %v444, %v445
      %v447 = vrot.slane %v446, 1
      %v448 = vmax.f32 %v446, %v447
      %v449 = vsel %vm424, %v440, -inf
      %v450 = vrot.slane %v449, 4
      %v451 = vmax.f32 %v449, %v450
      %v452 = vrot.slane %v451, 2
      %v453 = vmax.f32 %v451, %v452
      %v454 = vrot.slane %v453, 1
      %v455 = vmax.f32 %v453, %v454
      %v458 = vcombine.low %v431, %v438
      %v460 = vsub.f32 %v419, %v458
      %v463 = vcombine.low %v448, %v455
      %v465 = vsub.f32 %v420, %v463
      %v467 = vcombine.high %v460, %v460
      %v470 = vcombine.low %v465, %v465
      %v472 = vsel %vm424, %v460, %v470
      %v473 = vsel %vm424, %v467, %v465
      %v474 = vmul.f32 %v472, 1.442695
      %v475 = vpow.pop %v474
      %v476 = vmul.f32 %v473, 1.442695
      %v477 = vpow.pop %v476
      %v478 = vlaneseq
      %v479 = vshrl.u32 %v478, 7
      %vm480 = vcmp.lt.s32.totalorder %v479, 4
      %v481 = vsel %vm480, %v475, 0.0
      %v482 = vsel %vm480, %v477, 0.0
      %v483 = vrot.slane %v481, 4
      %v484 = vadd.f32 %v481, %v483
      %v485 = vrot.slane %v484, 2
      %v486 = vadd.f32 %v484, %v485
      %v487 = vrot.slane %v486, 1
      %v488 = vadd.f32 %v486, %v487
      %v489 = vrot.slane %v482, 4
      %v490 = vadd.f32 %v482, %v489
      %v491 = vrot.slane %v490, 2
      %v492 = vadd.f32 %v490, %v491
      %v493 = vrot.slane %v492, 1
      %v494 = vadd.f32 %v492, %v493
      %v495 = vrot.slane %v475, 4
      %v496 = vadd.f32 %v475, %v495
      %v497 = vrot.slane %v496, 2
      %v498 = vadd.f32 %v496, %v497
      %v499 = vrot.slane %v498, 1
      %v500 = vadd.f32 %v498, %v499
      %v501 = vrot.slane %v477, 4
      %v502 = vadd.f32 %v477, %v501
      %v503 = vrot.slane %v502, 2
      %v504 = vadd.f32 %v502, %v503
      %v505 = vrot.slane %v504, 1
      %v506 = vadd.f32 %v504, %v505
      %v507 = vsub.f32 %v500, %v488
      %v508 = vsub.f32 %v506, %v494
      %v509 = vmul.f32 %v488, %v507
      %v510 = vmul.f32 %v494, %v508
      %v511 = vlog2.pop %v509
      %v512 = vmul.f32 %v511, 0.6931472
      %v513 = vlog2.pop %v510
      %v514 = vmul.f32 %v513, 0.6931472
      %v515 = vlaneseq
      %v516 = vshrl.u32 %v515, 7
      %v517 = vsub.s32 0, %v516
      %v518 = vrot.slane %v394, %v517
      %v519 = vlaneseq
      %v520 = vshrl.u32 %v519, 7
      %v521 = vsub.s32 1, %v520
      %v522 = vrot.slane %v394, %v521
      %vm523 = vcmp.eq.s32.totalorder %v479, %v518
      %vm524 = vcmp.eq.s32.totalorder %v479, %v522
      %v525 = vsel %vm523, %v419, 0.0
      %v526 = vsel %vm524, %v422, 0.0
      %v527 = vsel %vm424, %v525, 0.0
      %v528 = vrot.slane %v527, 4
      %v529 = vadd.f32 %v527, %v528
      %v530 = vrot.slane %v529, 2
      %v531 = vadd.f32 %v529, %v530
      %v532 = vrot.slane %v531, 1
      %v533 = vadd.f32 %v531, %v532
      %v534 = vsel %vm424, %v526, 0.0
      %v535 = vrot.slane %v534, 4
      %v536 = vadd.f32 %v534, %v535
      %v537 = vrot.slane %v536, 2
      %v538 = vadd.f32 %v536, %v537
      %v539 = vrot.slane %v538, 1
      %v540 = vadd.f32 %v538, %v539
      %v541 = vsel %vm523, %v420, 0.0
      %v542 = vsel %vm524, %v440, 0.0
      %v543 = vsel %vm424, %v541, 0.0
      %v544 = vrot.slane %v543, 4
      %v545 = vadd.f32 %v543, %v544
      %v546 = vrot.slane %v545, 2
      %v547 = vadd.f32 %v545, %v546
      %v548 = vrot.slane %v547, 1
      %v549 = vadd.f32 %v547, %v548
      %v550 = vsel %vm424, %v542, 0.0
      %v551 = vrot.slane %v550, 4
      %v552 = vadd.f32 %v550, %v551
      %v553 = vrot.slane %v552, 2
      %v554 = vadd.f32 %v552, %v553
      %v555 = vrot.slane %v554, 1
      %v556 = vadd.f32 %v554, %v555
      %v557 = vadd.f32 %v533, %v549
      %v558 = vadd.f32 %v540, %v556
      %v559 = vadd.f32 %v431, %v448
      %v560 = vadd.f32 %v438, %v455
      %v561 = vadd.f32 %v559, %v512
      %v562 = vadd.f32 %v560, %v514
      %v563 = vsub.f32 %v561, %v557
      %v564 = vsub.f32 %v562, %v558
      %v565 = vld [vmem:[%s376] sm:$0x3]
      %v566 = vsel %vm417, %v563, 0.0
      %v567 = vsel %vm418, %v564, 0.0
      %v570 = vcombine.low %v566, %v567
      %v572 = vunpack.c.l.s4 1966171168
      %v573 = vunpack.c.0.s8 %v572
      %v574 = vlaneseq
      %v575 = vshrl.u32 %v574, 7
      %v576 = vsub.s32 %v573, %v575
      %v577 = vrot.slane %v570, %v576
      %v579 = vunpack.c.l.s4 1966171168
      %v580 = vunpack.c.0.s8 %v579
      %v581 = vlaneseq
      %v582 = vshrl.u32 %v581, 7
      %v583 = vsub.s32 %v580, %v582
      %v584 = vrot.slane %v577, %v583
      %v586 = vadd.f32 %v565, %v584
      %v587 = vlaneseq
      %vm588 = vcmp.ge.s32.totalorder %v587, 0
      %vm589 = vcmp.lt.s32.totalorder %v587, 256
      %vm590 = vmand %vm588, %vm589
      %591 = vst.msk [vmem:[%s376] sm:$0x3] %vm590, %v586
      %v592 = vld [vmem:[%s382] sm:$0x3]
      %v593 = vsel %vm417, 1, 0
      %v594 = vsel %vm418, 1, 0
      %v595 = vcvt.s32.f32 %v593
      %v596 = vcvt.s32.f32 %v594
      %v599 = vcombine.low %v595, %v596
      %v601 = vunpack.c.l.s4 1966171168
      %v602 = vunpack.c.0.s8 %v601
      %v603 = vlaneseq
      %v604 = vshrl.u32 %v603, 7
      %v605 = vsub.s32 %v602, %v604
      %v606 = vrot.slane %v599, %v605
      %v608 = vunpack.c.l.s4 1966171168
      %v609 = vunpack.c.0.s8 %v608
      %v610 = vlaneseq
      %v611 = vshrl.u32 %v610, 7
      %v612 = vsub.s32 %v609, %v611
      %v613 = vrot.slane %v606, %v612
      %v615 = vadd.f32 %v592, %v613
      %616 = vst.msk [vmem:[%s382] sm:$0x3] %vm590, %v615
      %s617 = sadd.s32 %s21, %s22
      %p618 = scmp.lt.s32.totalorder %s617, 1
      %s619 = scalar_select %p618, %s617, 1
      %s620 = smul.addr %s619, 2
      %s621 = scalar_lea.vmem %s3, %s620
      %s622 = sadd.s32 %s21, %s22
      %p623 = scmp.lt.s32.totalorder %s622, 1
      %s624 = scalar_select %p623, %s622, 1
      %s625 = smul.addr %s624, 2
      %s626 = scalar_lea.vmem %s4, %s625
      // Predicated region
      $region37: #{cdnetv2_loss.1} parent=31 // pred_check
        %p627 = pneg %p157
      $region38: #{cdnetv2_loss.1} parent=31 // pred_check_branch
        %629 = sbr.rel (%p627) target = $region40
      $region39: #{cdnetv2_loss.1} parent=31 // pred_region
        %s630 = sadd.s32 %s21, %s22
      $region40: #{cdnetv2_loss.1} parent=31 // pred_fallthru
        _
      // Predicated region
      $region41: #{cdnetv2_loss.1} parent=31 // pred_check
        %p631 = pneg %p185
      $region42: #{cdnetv2_loss.1} parent=31 // pred_check_branch
        %633 = sbr.rel (%p631) target = $region44
      $region43: #{cdnetv2_loss.1} parent=31 // pred_region
        %s634 = sadd.s32 %s21, %s22
      $region44: #{cdnetv2_loss.1} parent=31 // pred_fallthru
        _
    $region32: #{cdnetv2_loss.1} parent=5 // pred_fallthru
      _
    %p635 = scmp.le.s32.totalorder 2, %s11
    // Predicated region
    $region45: #{cdnetv2_loss.1} parent=5 // pred_check
      %p636 = pneg %p635
    $region46: #{cdnetv2_loss.1} parent=5 // pred_check_branch
      %638 = sbr.rel (%p636) target = $region48
    $region47: #{cdnetv2_loss.1} parent=5 // pred_region
      %s639 = ssub.s32 %s11, 2
      // Predicated region
      $region49: #{cdnetv2_loss.1} parent=47 // pred_check
        %p640 = pneg %p163
      $region50: #{cdnetv2_loss.1} parent=47 // pred_check_branch
        %642 = sbr.rel (%p640) target = $region52
      $region51: #{cdnetv2_loss.1} parent=47 // pred_region
        %s643 = sadd.s32 %s24, %s25
        %p644 = scmp.lt.s32.totalorder %s643, 1
        %s645 = scalar_select %p644, %s643, 1
        %s646 = smul.addr %s645, 2
        %s647 = scalar_lea.vmem %s3, %s646
      $region52: #{cdnetv2_loss.1} parent=47 // pred_fallthru
        _
      // Predicated region
      $region53: #{cdnetv2_loss.1} parent=47 // pred_check
        %p648 = pneg %p191
      $region54: #{cdnetv2_loss.1} parent=47 // pred_check_branch
        %650 = sbr.rel (%p648) target = $region56
      $region55: #{cdnetv2_loss.1} parent=47 // pred_region
        %s651 = sadd.s32 %s24, %s25
        %p652 = scmp.lt.s32.totalorder %s651, 1
        %s653 = scalar_select %p652, %s651, 1
        %s654 = smul.addr %s653, 2
        %s655 = scalar_lea.vmem %s4, %s654
      $region56: #{cdnetv2_loss.1} parent=47 // pred_fallthru
        _
    $region48: #{cdnetv2_loss.1} parent=5 // pred_fallthru
      _
  $region6: #{cdnetv2_loss.1} parent=0 // loop_footer
    %s15 = sadd.s32 1, %s11
  $region7: #{cdnetv2_loss.1} parent=0 // loop_footer_branch
    %10 = sbr.rel target = $region3
  $region8: #{cdnetv2_loss.1} parent=0 // loop_exit
    _

</llo_original>
